<compile_context>
chip_gen: v7x
topology: tpu7x:2x2x1
jax: 0.10.0
libtpu: 0.0.40
codegen_flags: <defaults>
</compile_context>

<pallas_src>
import functools

import jax
import jax.numpy as jnp
from jax.experimental import pallas as pl
from jax.experimental.pallas import tpu as pltpu


def _basic_block_kernel(xpad_ref, w1_ref, b1_ref, w2_ref, b2_ref, o_ref,
                        act_scr, *, H, W, Cin, Cout):
    WCp = (W + 2) * Cout          # padded row width of the conv2 activation
    WCo = W * Cout                # output row width

    # ---- conv1 (BN1 scale folded into weights): 3 row-band matmuls ---------
    acc1 = jnp.zeros((H, WCo), jnp.float32)
    for ky in range(3):
        band = xpad_ref[0, ky:ky + H, :].astype(jnp.bfloat16)   # (H,(W+2)*Cin)
        acc1 = acc1 + jnp.dot(band, w1_ref[ky],
                              preferred_element_type=jnp.float32)
    out1 = jnp.maximum(acc1 + b1_ref[...], 0.0)                 # bias + ReLU

    # ---- stage relu(bn1(conv1(x))) into padded scratch ----------------------
    # Re-zero only the 1-wide halo ring (cheap), then write the interior.
    act_scr[0:1, :] = jnp.zeros((1, WCp), jnp.float32)
    act_scr[H + 1:H + 2, :] = jnp.zeros((1, WCp), jnp.float32)
    act_scr[1:H + 1, 0:Cout] = jnp.zeros((H, Cout), jnp.float32)
    act_scr[1:H + 1, (W + 1) * Cout:(W + 2) * Cout] = jnp.zeros(
        (H, Cout), jnp.float32)
    act_scr[1:H + 1, Cout:(W + 1) * Cout] = out1

    # ---- conv2 (BN2 scale folded): 3 row-band matmuls ------------------------
    acc2 = jnp.zeros((H, WCo), jnp.float32)
    for ky in range(3):
        band = act_scr[ky:ky + H, :].astype(jnp.bfloat16)       # (H,(W+2)*Cout)
        acc2 = acc2 + jnp.dot(band, w2_ref[ky],
                              preferred_element_type=jnp.float32)
    out2 = acc2 + b2_ref[...]

    # ---- residual (interior of the padded input) + final ReLU ---------------
    resid = xpad_ref[0, 1:H + 1, Cin:(W + 1) * Cin]             # (H, W*Cin) f32
    o_ref[0] = jnp.maximum(out2 + resid, 0.0).astype(o_ref.dtype)


def _band_weights(w_oihw, scale, W):
    """Fold the BN scale into the conv weight and lay it out as 3 banded mats.

    w_oihw: (Cout, Cin, 3, 3) float32, scale: (Cout,).
    Returns (3, (W+2)*Cin, W*Cout) bfloat16.  Band `ky` maps one contiguous
    (H, (W+2)*Cin) row-strip of the zero-padded NHWC input directly onto the
    (H, W*Cout) output strip, so a 3x3 conv is just 3 MXU matmuls.
    """
    Cout, Cin = w_oihw.shape[0], w_oihw.shape[1]
    w = (w_oihw * scale[:, None, None, None]).astype(jnp.float32)
    w = jnp.transpose(w, (2, 3, 1, 0))                   # (ky, kx, Cin, Cout)
    eye = jnp.eye(W, dtype=jnp.float32)
    bands = []
    for ky in range(3):
        B = jnp.zeros(((W + 2) * Cin, W * Cout), jnp.float32)
        for kx in range(3):
            blk = jnp.kron(eye, w[ky, kx])               # (W*Cin, W*Cout)
            B = B + jnp.pad(blk, ((kx * Cin, (2 - kx) * Cin), (0, 0)))
        bands.append(B)
    return jnp.stack(bands).astype(jnp.bfloat16)


def basic_block_forward(x_nchw, params, eps=1e-5):
    """x_nchw: (N, C, H, W) float32 (PyTorch layout). Returns (N, C, H, W)."""
    (w1, g1, be1, rm1, rv1, w2, g2, be2, rm2, rv2) = params
    N, Cin, H, W = x_nchw.shape
    Cout = w1.shape[0]
    assert Cin == Cout, "stride=1 / downsample=None requires inplanes == planes"

    # NHWC, zero-pad H/W by 1, flatten (W+2, C) into one lane axis.
    x = jnp.transpose(x_nchw, (0, 2, 3, 1)).astype(jnp.float32)
    xpad = jnp.pad(x, ((0, 0), (1, 1), (1, 1), (0, 0)))
    xpad = xpad.reshape(N, H + 2, (W + 2) * Cin)

    # Fold eval-mode BatchNorm into per-channel scale / bias.
    s1 = g1 / jnp.sqrt(rv1 + eps)
    b1 = be1 - rm1 * s1
    s2 = g2 / jnp.sqrt(rv2 + eps)
    b2 = be2 - rm2 * s2

    w1b = _band_weights(w1, s1, W)        # (3, (W+2)*Cin,  W*Cout) bf16
    w2b = _band_weights(w2, s2, W)        # (3, (W+2)*Cout, W*Cout) bf16
    b1t = jnp.tile(b1, W).reshape(1, W * Cout).astype(jnp.float32)
    b2t = jnp.tile(b2, W).reshape(1, W * Cout).astype(jnp.float32)

    kernel = functools.partial(_basic_block_kernel, H=H, W=W, Cin=Cin, Cout=Cout)

    out = pl.pallas_call(
        kernel,
        out_shape=jax.ShapeDtypeStruct((N, H, W * Cout), jnp.float32),
        grid_spec=pltpu.PrefetchScalarGridSpec(
            num_scalar_prefetch=0,
            grid=(N,),
            in_specs=[
                pl.BlockSpec((1, H + 2, (W + 2) * Cin), lambda b: (b, 0, 0)),
                pl.BlockSpec((3, (W + 2) * Cin, W * Cout), lambda b: (0, 0, 0)),
                pl.BlockSpec((1, W * Cout), lambda b: (0, 0)),
                pl.BlockSpec((3, (W + 2) * Cout, W * Cout), lambda b: (0, 0, 0)),
                pl.BlockSpec((1, W * Cout), lambda b: (0, 0)),
            ],
            out_specs=pl.BlockSpec((1, H, W * Cout), lambda b: (b, 0, 0)),
            scratch_shapes=[pltpu.VMEM((H + 2, (W + 2) * Cout), jnp.float32)],
        ),
        compiler_params=pltpu.CompilerParams(
            dimension_semantics=("parallel",)),
    )(xpad, w1b, b1t, w2b, b2t)

    # (N, H, W*C) -> NCHW
    return jnp.transpose(out.reshape(N, H, W, Cout), (0, 3, 1, 2))


def _reference(x, params, eps=1e-5):
    """Pure-JAX NCHW reference for the same forward (eval-mode BN)."""
    w1, g1, be1, rm1, rv1, w2, g2, be2, rm2, rv2 = params

    def conv(z, w):
        return jax.lax.conv_general_dilated(
            z, w, window_strides=(1, 1), padding=((1, 1), (1, 1)),
            dimension_numbers=("NCHW", "OIHW", "NCHW"),
            precision=jax.lax.Precision.HIGHEST)

    def bn(z, g, b, m, v):
        c = lambda a: a[None, :, None, None]
        return (z - c(m)) / jnp.sqrt(c(v) + eps) * c(g) + c(b)

    out = jax.nn.relu(bn(conv(x, w1), g1, be1, rm1, rv1))
    out = bn(conv(out, w2), g2, be2, rm2, rv2)
    return jax.nn.relu(out + x)


if __name__ == "__main__":
    # BasicBlock(inplanes=4, planes=4, stride=1, downsample=None)
    N, C, H, W = 2, 4, 16, 16
    key = jax.random.PRNGKey(0)
    ks = jax.random.split(key, 12)

    x = jax.random.normal(ks[0], (N, C, H, W), jnp.float32)

    w1 = 0.2 * jax.random.normal(ks[1], (C, C, 3, 3), jnp.float32)
    w2 = 0.2 * jax.random.normal(ks[2], (C, C, 3, 3), jnp.float32)
    g1 = 1.0 + 0.1 * jax.random.normal(ks[3], (C,), jnp.float32)
    be1 = 0.1 * jax.random.normal(ks[4], (C,), jnp.float32)
    rm1 = 0.1 * jax.random.normal(ks[5], (C,), jnp.float32)
    rv1 = jnp.abs(1.0 + 0.1 * jax.random.normal(ks[6], (C,), jnp.float32))
    g2 = 1.0 + 0.1 * jax.random.normal(ks[7], (C,), jnp.float32)
    be2 = 0.1 * jax.random.normal(ks[8], (C,), jnp.float32)
    rm2 = 0.1 * jax.random.normal(ks[9], (C,), jnp.float32)
    rv2 = jnp.abs(1.0 + 0.1 * jax.random.normal(ks[10], (C,), jnp.float32))

    params = (w1, g1, be1, rm1, rv1, w2, g2, be2, rm2, rv2)

    out = basic_block_forward(x, params)
    out = jax.block_until_ready(out)

    ref = jax.block_until_ready(_reference(x, params))
    assert out.shape == ref.shape == (N, C, H, W)
    # bf16 MXU operands (f32 accumulation) -> slightly looser tolerance.
    assert jnp.allclose(out, ref, atol=2e-2, rtol=2e-2), (
        f"max abs diff = {jnp.max(jnp.abs(out - ref))}")

    print("KERNEL_OK")
</pallas_src>

<mosaic_0001>
module attributes {stable_mosaic.version = 11 : i64} {
  func.func @_basic_block_kernel(%arg0: i32, %arg1: memref<1x18x72xf32, #tpu.memory_space<vmem>>, %arg2: memref<3x72x64xbf16, #tpu.memory_space<vmem>>, %arg3: memref<1x64xf32, #tpu.memory_space<vmem>>, %arg4: memref<3x72x64xbf16, #tpu.memory_space<vmem>>, %arg5: memref<1x64xf32, #tpu.memory_space<vmem>>, %arg6: memref<1x16x64xf32, #tpu.memory_space<vmem>>, %arg7: memref<18x72xf32, #tpu.memory_space<vmem>>) attributes {dimension_semantics = [#tpu.dimension_semantics<parallel>], iteration_bounds = array<i64: 2>, scalar_prefetch = 0 : i64, scratch_operands = 1 : i64, tpu.core_type = #tpu.core_type<tc>, window_params = [{transform_indices = @transform_0, window_bounds = array<i64: 1, 18, 72>}, {pipeline_mode = #tpu.pipeline_mode<synchronous>, transform_indices = @transform_1, window_bounds = array<i64: 3, 72, 64>}, {pipeline_mode = #tpu.pipeline_mode<synchronous>, transform_indices = @transform_2, window_bounds = array<i64: 1, 64>}, {pipeline_mode = #tpu.pipeline_mode<synchronous>, transform_indices = @transform_3, window_bounds = array<i64: 3, 72, 64>}, {pipeline_mode = #tpu.pipeline_mode<synchronous>, transform_indices = @transform_4, window_bounds = array<i64: 1, 64>}, {transform_indices = @transform_5, window_bounds = array<i64: 1, 16, 64>}]} {
    %cst = arith.constant 0.000000e+00 : f32
    %0 = vector.broadcast %cst : f32 to vector<16x64xf32>
    %c0 = arith.constant 0 : index
    %c0_0 = arith.constant 0 : index
    %c0_1 = arith.constant 0 : index
    %1 = vector.load %arg1[%c0, %c0_0, %c0_1] : memref<1x18x72xf32, #tpu.memory_space<vmem>>, vector<1x16x72xf32>
    %2 = vector.shape_cast %1 : vector<1x16x72xf32> to vector<16x72xf32>
    %3 = arith.truncf %2 : vector<16x72xf32> to vector<16x72xbf16>
    %c0_2 = arith.constant 0 : index
    %c0_3 = arith.constant 0 : index
    %c0_4 = arith.constant 0 : index
    %4 = vector.load %arg2[%c0_2, %c0_3, %c0_4] : memref<3x72x64xbf16, #tpu.memory_space<vmem>>, vector<1x72x64xbf16>
    %5 = vector.shape_cast %4 : vector<1x72x64xbf16> to vector<72x64xbf16>
    %cst_5 = arith.constant dense<0.000000e+00> : vector<16x64xf32>
    %6 = tpu.matmul %3, %5, %cst_5 {dimension_numbers = #tpu.dot_dimension_numbers<[1], [0], [0], [1], [0, 0, 1, 1], [], []>} : vector<16x72xbf16>, vector<72x64xbf16>, vector<16x64xf32> -> vector<16x64xf32>
    %7 = arith.addf %0, %6 : vector<16x64xf32>
    %c0_6 = arith.constant 0 : index
    %c1 = arith.constant 1 : index
    %c0_7 = arith.constant 0 : index
    %8 = vector.load %arg1[%c0_6, %c1, %c0_7] : memref<1x18x72xf32, #tpu.memory_space<vmem>>, vector<1x16x72xf32>
    %9 = vector.shape_cast %8 : vector<1x16x72xf32> to vector<16x72xf32>
    %10 = arith.truncf %9 : vector<16x72xf32> to vector<16x72xbf16>
    %c1_8 = arith.constant 1 : index
    %c0_9 = arith.constant 0 : index
    %c0_10 = arith.constant 0 : index
    %11 = vector.load %arg2[%c1_8, %c0_9, %c0_10] : memref<3x72x64xbf16, #tpu.memory_space<vmem>>, vector<1x72x64xbf16>
    %12 = vector.shape_cast %11 : vector<1x72x64xbf16> to vector<72x64xbf16>
    %cst_11 = arith.constant dense<0.000000e+00> : vector<16x64xf32>
    %13 = tpu.matmul %10, %12, %cst_11 {dimension_numbers = #tpu.dot_dimension_numbers<[1], [0], [0], [1], [0, 0, 1, 1], [], []>} : vector<16x72xbf16>, vector<72x64xbf16>, vector<16x64xf32> -> vector<16x64xf32>
    %14 = arith.addf %7, %13 : vector<16x64xf32>
    %c0_12 = arith.constant 0 : index
    %c2 = arith.constant 2 : index
    %c0_13 = arith.constant 0 : index
    %15 = vector.load %arg1[%c0_12, %c2, %c0_13] : memref<1x18x72xf32, #tpu.memory_space<vmem>>, vector<1x16x72xf32>
    %16 = vector.shape_cast %15 : vector<1x16x72xf32> to vector<16x72xf32>
    %17 = arith.truncf %16 : vector<16x72xf32> to vector<16x72xbf16>
    %c2_14 = arith.constant 2 : index
    %c0_15 = arith.constant 0 : index
    %c0_16 = arith.constant 0 : index
    %18 = vector.load %arg2[%c2_14, %c0_15, %c0_16] : memref<3x72x64xbf16, #tpu.memory_space<vmem>>, vector<1x72x64xbf16>
    %19 = vector.shape_cast %18 : vector<1x72x64xbf16> to vector<72x64xbf16>
    %cst_17 = arith.constant dense<0.000000e+00> : vector<16x64xf32>
    %20 = tpu.matmul %17, %19, %cst_17 {dimension_numbers = #tpu.dot_dimension_numbers<[1], [0], [0], [1], [0, 0, 1, 1], [], []>} : vector<16x72xbf16>, vector<72x64xbf16>, vector<16x64xf32> -> vector<16x64xf32>
    %21 = arith.addf %14, %20 : vector<16x64xf32>
    %c0_18 = arith.constant 0 : index
    %c0_19 = arith.constant 0 : index
    %22 = vector.load %arg3[%c0_18, %c0_19] : memref<1x64xf32, #tpu.memory_space<vmem>>, vector<1x64xf32>
    %23 = vector.broadcast %22 : vector<1x64xf32> to vector<16x64xf32>
    %24 = arith.addf %21, %23 : vector<16x64xf32>
    %cst_20 = arith.constant 0.000000e+00 : f32
    %25 = vector.broadcast %cst_20 : f32 to vector<16x64xf32>
    %26 = arith.maximumf %24, %25 : vector<16x64xf32>
    %cst_21 = arith.constant 0.000000e+00 : f32
    %27 = vector.broadcast %cst_21 : f32 to vector<1x72xf32>
    %c0_22 = arith.constant 0 : index
    %c0_23 = arith.constant 0 : index
    %28 = vector.load %arg7[%c0_22, %c0_23] : memref<18x72xf32, #tpu.memory_space<vmem>>, vector<1x72xf32>
    tpu.vector_store %arg7[%c0_22, %c0_23], %27 {strides = array<i32>} : memref<18x72xf32, #tpu.memory_space<vmem>>, vector<1x72xf32>,
    %cst_24 = arith.constant 0.000000e+00 : f32
    %29 = vector.broadcast %cst_24 : f32 to vector<1x72xf32>
    %c17 = arith.constant 17 : index
    %c0_25 = arith.constant 0 : index
    %30 = vector.load %arg7[%c17, %c0_25] : memref<18x72xf32, #tpu.memory_space<vmem>>, vector<1x72xf32>
    tpu.vector_store %arg7[%c17, %c0_25], %29 {strides = array<i32>} : memref<18x72xf32, #tpu.memory_space<vmem>>, vector<1x72xf32>,
    %cst_26 = arith.constant 0.000000e+00 : f32
    %31 = vector.broadcast %cst_26 : f32 to vector<16x4xf32>
    %c1_27 = arith.constant 1 : index
    %c0_28 = arith.constant 0 : index
    %32 = vector.load %arg7[%c1_27, %c0_28] : memref<18x72xf32, #tpu.memory_space<vmem>>, vector<16x4xf32>
    tpu.vector_store %arg7[%c1_27, %c0_28], %31 {strides = array<i32>} : memref<18x72xf32, #tpu.memory_space<vmem>>, vector<16x4xf32>,
    %cst_29 = arith.constant 0.000000e+00 : f32
    %33 = vector.broadcast %cst_29 : f32 to vector<16x4xf32>
    %c1_30 = arith.constant 1 : index
    %c68 = arith.constant 68 : index
    %34 = vector.load %arg7[%c1_30, %c68] : memref<18x72xf32, #tpu.memory_space<vmem>>, vector<16x4xf32>
    tpu.vector_store %arg7[%c1_30, %c68], %33 {strides = array<i32>} : memref<18x72xf32, #tpu.memory_space<vmem>>, vector<16x4xf32>,
    %c1_31 = arith.constant 1 : index
    %c4 = arith.constant 4 : index
    %35 = vector.load %arg7[%c1_31, %c4] : memref<18x72xf32, #tpu.memory_space<vmem>>, vector<16x64xf32>
    tpu.vector_store %arg7[%c1_31, %c4], %26 {strides = array<i32>} : memref<18x72xf32, #tpu.memory_space<vmem>>, vector<16x64xf32>,
    %cst_32 = arith.constant 0.000000e+00 : f32
    %36 = vector.broadcast %cst_32 : f32 to vector<16x64xf32>
    %c0_33 = arith.constant 0 : index
    %c0_34 = arith.constant 0 : index
    %37 = vector.load %arg7[%c0_33, %c0_34] : memref<18x72xf32, #tpu.memory_space<vmem>>, vector<16x72xf32>
    %38 = arith.truncf %37 : vector<16x72xf32> to vector<16x72xbf16>
    %c0_35 = arith.constant 0 : index
    %c0_36 = arith.constant 0 : index
    %c0_37 = arith.constant 0 : index
    %39 = vector.load %arg4[%c0_35, %c0_36, %c0_37] : memref<3x72x64xbf16, #tpu.memory_space<vmem>>, vector<1x72x64xbf16>
    %40 = vector.shape_cast %39 : vector<1x72x64xbf16> to vector<72x64xbf16>
    %cst_38 = arith.constant dense<0.000000e+00> : vector<16x64xf32>
    %41 = tpu.matmul %38, %40, %cst_38 {dimension_numbers = #tpu.dot_dimension_numbers<[1], [0], [0], [1], [0, 0, 1, 1], [], []>} : vector<16x72xbf16>, vector<72x64xbf16>, vector<16x64xf32> -> vector<16x64xf32>
    %42 = arith.addf %36, %41 : vector<16x64xf32>
    %c1_39 = arith.constant 1 : index
    %c0_40 = arith.constant 0 : index
    %43 = vector.load %arg7[%c1_39, %c0_40] : memref<18x72xf32, #tpu.memory_space<vmem>>, vector<16x72xf32>
    %44 = arith.truncf %43 : vector<16x72xf32> to vector<16x72xbf16>
    %c1_41 = arith.constant 1 : index
    %c0_42 = arith.constant 0 : index
    %c0_43 = arith.constant 0 : index
    %45 = vector.load %arg4[%c1_41, %c0_42, %c0_43] : memref<3x72x64xbf16, #tpu.memory_space<vmem>>, vector<1x72x64xbf16>
    %46 = vector.shape_cast %45 : vector<1x72x64xbf16> to vector<72x64xbf16>
    %cst_44 = arith.constant dense<0.000000e+00> : vector<16x64xf32>
    %47 = tpu.matmul %44, %46, %cst_44 {dimension_numbers = #tpu.dot_dimension_numbers<[1], [0], [0], [1], [0, 0, 1, 1], [], []>} : vector<16x72xbf16>, vector<72x64xbf16>, vector<16x64xf32> -> vector<16x64xf32>
    %48 = arith.addf %42, %47 : vector<16x64xf32>
    %c2_45 = arith.constant 2 : index
    %c0_46 = arith.constant 0 : index
    %49 = vector.load %arg7[%c2_45, %c0_46] : memref<18x72xf32, #tpu.memory_space<vmem>>, vector<16x72xf32>
    %50 = arith.truncf %49 : vector<16x72xf32> to vector<16x72xbf16>
    %c2_47 = arith.constant 2 : index
    %c0_48 = arith.constant 0 : index
    %c0_49 = arith.constant 0 : index
    %51 = vector.load %arg4[%c2_47, %c0_48, %c0_49] : memref<3x72x64xbf16, #tpu.memory_space<vmem>>, vector<1x72x64xbf16>
    %52 = vector.shape_cast %51 : vector<1x72x64xbf16> to vector<72x64xbf16>
    %cst_50 = arith.constant dense<0.000000e+00> : vector<16x64xf32>
    %53 = tpu.matmul %50, %52, %cst_50 {dimension_numbers = #tpu.dot_dimension_numbers<[1], [0], [0], [1], [0, 0, 1, 1], [], []>} : vector<16x72xbf16>, vector<72x64xbf16>, vector<16x64xf32> -> vector<16x64xf32>
    %54 = arith.addf %48, %53 : vector<16x64xf32>
    %c0_51 = arith.constant 0 : index
    %c0_52 = arith.constant 0 : index
    %55 = vector.load %arg5[%c0_51, %c0_52] : memref<1x64xf32, #tpu.memory_space<vmem>>, vector<1x64xf32>
    %56 = vector.broadcast %55 : vector<1x64xf32> to vector<16x64xf32>
    %57 = arith.addf %54, %56 : vector<16x64xf32>
    %c0_53 = arith.constant 0 : index
    %c1_54 = arith.constant 1 : index
    %c4_55 = arith.constant 4 : index
    %58 = vector.load %arg1[%c0_53, %c1_54, %c4_55] : memref<1x18x72xf32, #tpu.memory_space<vmem>>, vector<1x16x64xf32>
    %59 = vector.shape_cast %58 : vector<1x16x64xf32> to vector<16x64xf32>
    %60 = arith.addf %57, %59 : vector<16x64xf32>
    %cst_56 = arith.constant 0.000000e+00 : f32
    %61 = vector.broadcast %cst_56 : f32 to vector<16x64xf32>
    %62 = arith.maximumf %60, %61 : vector<16x64xf32>
    %c0_57 = arith.constant 0 : index
    %c0_58 = arith.constant 0 : index
    %c0_59 = arith.constant 0 : index
    %63 = vector.load %arg6[%c0_57, %c0_58, %c0_59] : memref<1x16x64xf32, #tpu.memory_space<vmem>>, vector<1x16x64xf32>
    %64 = vector.shape_cast %63 : vector<1x16x64xf32> to vector<16x64xf32>
    %65 = vector.shape_cast %62 : vector<16x64xf32> to vector<1x16x64xf32>
    tpu.vector_store %arg6[%c0_57, %c0_58, %c0_59], %65 {strides = array<i32>} : memref<1x16x64xf32, #tpu.memory_space<vmem>>, vector<1x16x64xf32>,
    return
  }
  func.func @transform_0(%arg0: i32) -> (i32, i32, i32) {
    %c0_i32 = arith.constant 0 : i32
    %c0_i32_0 = arith.constant 0 : i32
    %c0_i32_1 = arith.constant 0 : i32
    return %arg0, %c0_i32, %c0_i32_0 : i32, i32, i32
  }
  func.func @transform_1(%arg0: i32) -> (i32, i32, i32) {
    %c0_i32 = arith.constant 0 : i32
    %c0_i32_0 = arith.constant 0 : i32
    %c0_i32_1 = arith.constant 0 : i32
    %c0_i32_2 = arith.constant 0 : i32
    return %c0_i32, %c0_i32_0, %c0_i32_1 : i32, i32, i32
  }
  func.func @transform_2(%arg0: i32) -> (i32, i32) {
    %c0_i32 = arith.constant 0 : i32
    %c0_i32_0 = arith.constant 0 : i32
    %c0_i32_1 = arith.constant 0 : i32
    return %c0_i32, %c0_i32_0 : i32, i32
  }
  func.func @transform_3(%arg0: i32) -> (i32, i32, i32) {
    %c0_i32 = arith.constant 0 : i32
    %c0_i32_0 = arith.constant 0 : i32
    %c0_i32_1 = arith.constant 0 : i32
    %c0_i32_2 = arith.constant 0 : i32
    return %c0_i32, %c0_i32_0, %c0_i32_1 : i32, i32, i32
  }
  func.func @transform_4(%arg0: i32) -> (i32, i32) {
    %c0_i32 = arith.constant 0 : i32
    %c0_i32_0 = arith.constant 0 : i32
    %c0_i32_1 = arith.constant 0 : i32
    return %c0_i32, %c0_i32_0 : i32, i32
  }
  func.func @transform_5(%arg0: i32) -> (i32, i32, i32) {
    %c0_i32 = arith.constant 0 : i32
    %c0_i32_0 = arith.constant 0 : i32
    %c0_i32_1 = arith.constant 0 : i32
    return %arg0, %c0_i32, %c0_i32_0 : i32, i32, i32
  }
}

</mosaic_0001>

<llo_original>
// kernel: tpu_custom_call.1
$region0: #{tpu_custom_call.1}
  #allocation0 [shape = 'u32[]', space=smem, size = 0x4, offset = 0x4, fixed_abs, tag = 'smem constant byte address 0x4 - core index']
  #allocation1 [shape = 'u32[144,128]{1,0:T(1,128)}', space=vmem, size = 0x12000, scoped, tag = 'internal scratch']
  #allocation2 [shape = 'f32[18,72]{1,0:T(8,128)}', space=vmem, size = 0x3000, scoped, tag = 'scratch operand']
  %s0 = inlined_call_operand.vmem [shape: f32[2,18,72], index: 0, kind: input, shape index: {}]
  %s1 = inlined_call_operand.vmem [shape: bf16[3,72,64], index: 1, kind: input, shape index: {}]
  %s2 = inlined_call_operand.vmem [shape: f32[1,64], index: 2, kind: input, shape index: {}]
  %s3 = inlined_call_operand.vmem [shape: bf16[3,72,64], index: 3, kind: input, shape index: {}]
  %s4 = inlined_call_operand.vmem [shape: f32[1,64], index: 4, kind: input, shape index: {}]
  %s5 = inlined_call_operand.hbm [shape: f32[2,16,64], index: 5, kind: output, shape index: {}]
  %s6 = sld [smem:[#allocation0]]
  $region53: #{tpu_custom_call.1} parent=0
    _
  %s8 = ssub.s32 1, %s6
  %s9 = scalar_select 0, %s8, %s6
  $region1: #{tpu_custom_call.1} parent=0
    #allocation3 [shape = 'u8[16384]{0}', space=vmem, size = 0x4000, scoped, tag = 'output window, operand 0']
    #allocation4 [shape = 's32[2]{0}', space=sflag, size = 0x8, scoped, tag = 'scoped memory for tpu_custom_call.1']
    %10 = vsyncpa [#allocation4], 0
    %s11 = scalar_lea.sflag [#allocation4], 1
    %12 = vsyncpa %s11, 0
    loop: start=0, step=1, limit=4
    $region2: #{tpu_custom_call.1} parent=1 // loop_pre_header
      _
    $region3: #{tpu_custom_call.1} parent=1 // loop_header
      %s14 = sphi 0, %s18
      %p15 = scmp.ge.s32.totalorder %s14, 4
      %s24 = sphi 0, %s26
      %s27 = sphi 0, %s24
      %s28 = sphi 0, %s27
      %s44 = sphi 0, %s28
      %s48 = sphi 0, %s48
      %s50 = sphi 0, %s48
      %s51 = sphi 0, %s50
      %s65 = sphi 0, %s51
      %s69 = sphi 0, %s69
      %s71 = sphi 0, %s69
      %s72 = sphi 0, %s71
      %s86 = sphi 0, %s72
      %s90 = sphi 0, %s90
      %s92 = sphi 0, %s90
      %s93 = sphi 0, %s92
      %s107 = sphi 0, %s93
      %s111 = sphi 0, %s111
      %s113 = sphi 0, %s111
      %s114 = sphi 0, %s113
      %s128 = sphi 0, %s114
      %s134 = sphi 0, %s136
      %s137 = sphi 0, %s134
      %s138 = sphi 0, %s137
      %s154 = sphi 0, %s138
    $region4: #{tpu_custom_call.1} parent=1 // loop_header_branch
      %17 = sbr.rel (%p15) target = $region8
    $region5: #{tpu_custom_call.1} parent=1 // loop_body
      %s19 = ssub.s32 %s14, 1
      %s20 = ssub.s32 %s14, 2
      %s21 = sadd.s32 %s14, 1
      %s22 = ssub.s32 %s14, %s21
      %p23 = scmp.eq.s32.totalorder %s22, 0
      %s25 = sadd.s32 %s24, 1
      %s26 = scalar_select %p23, %s24, %s25
      %p29 = pneg %p23
      %p30 = scmp.eq.s32.totalorder %s14, 1
      %p31 = por %p29, %p30
      %p32 = scmp.ne.s32.totalorder %s24, %s27
      %p33 = scmp.eq.s32.totalorder %s14, 0
      %p34 = por %p32, %p33
      %p35 = scmp.ne.s32.totalorder %s24, %s27
      %p36 = scmp.eq.s32.totalorder %s19, 1
      %p37 = por %p35, %p36
      %p38 = scmp.ne.s32.totalorder %s27, %s28
      %p39 = scmp.eq.s32.totalorder %s19, 0
      %p40 = por %p38, %p39
      %p41 = scmp.ne.s32.totalorder %s27, %s28
      %p42 = scmp.eq.s32.totalorder %s20, 1
      %p43 = por %p41, %p42
      %p45 = scmp.ne.s32.totalorder %s28, %s44
      %p46 = scmp.eq.s32.totalorder %s20, 0
      %p47 = por %p45, %p46
      %s49 = sadd.s32 %s48, 1
      %p52 = scmp.eq.s32.totalorder %s14, 1
      %p53 = scmp.ne.s32.totalorder %s48, %s50
      %p54 = scmp.eq.s32.totalorder %s14, 0
      %p55 = por %p53, %p54
      %p56 = scmp.ne.s32.totalorder %s48, %s50
      %p57 = scmp.eq.s32.totalorder %s19, 1
      %p58 = por %p56, %p57
      %p59 = scmp.ne.s32.totalorder %s50, %s51
      %p60 = scmp.eq.s32.totalorder %s19, 0
      %p61 = por %p59, %p60
      %p62 = scmp.ne.s32.totalorder %s50, %s51
      %p63 = scmp.eq.s32.totalorder %s20, 1
      %p64 = por %p62, %p63
      %p66 = scmp.ne.s32.totalorder %s51, %s65
      %p67 = scmp.eq.s32.totalorder %s20, 0
      %p68 = por %p66, %p67
      %s70 = sadd.s32 %s69, 1
      %p73 = scmp.eq.s32.totalorder %s14, 1
      %p74 = scmp.ne.s32.totalorder %s69, %s71
      %p75 = scmp.eq.s32.totalorder %s14, 0
      %p76 = por %p74, %p75
      %p77 = scmp.ne.s32.totalorder %s69, %s71
      %p78 = scmp.eq.s32.totalorder %s19, 1
      %p79 = por %p77, %p78
      %p80 = scmp.ne.s32.totalorder %s71, %s72
      %p81 = scmp.eq.s32.totalorder %s19, 0
      %p82 = por %p80, %p81
      %p83 = scmp.ne.s32.totalorder %s71, %s72
      %p84 = scmp.eq.s32.totalorder %s20, 1
      %p85 = por %p83, %p84
      %p87 = scmp.ne.s32.totalorder %s72, %s86
      %p88 = scmp.eq.s32.totalorder %s20, 0
      %p89 = por %p87, %p88
      %s91 = sadd.s32 %s90, 1
      %p94 = scmp.eq.s32.totalorder %s14, 1
      %p95 = scmp.ne.s32.totalorder %s90, %s92
      %p96 = scmp.eq.s32.totalorder %s14, 0
      %p97 = por %p95, %p96
      %p98 = scmp.ne.s32.totalorder %s90, %s92
      %p99 = scmp.eq.s32.totalorder %s19, 1
      %p100 = por %p98, %p99
      %p101 = scmp.ne.s32.totalorder %s92, %s93
      %p102 = scmp.eq.s32.totalorder %s19, 0
      %p103 = por %p101, %p102
      %p104 = scmp.ne.s32.totalorder %s92, %s93
      %p105 = scmp.eq.s32.totalorder %s20, 1
      %p106 = por %p104, %p105
      %p108 = scmp.ne.s32.totalorder %s93, %s107
      %p109 = scmp.eq.s32.totalorder %s20, 0
      %p110 = por %p108, %p109
      %s112 = sadd.s32 %s111, 1
      %p115 = scmp.eq.s32.totalorder %s14, 1
      %p116 = scmp.ne.s32.totalorder %s111, %s113
      %p117 = scmp.eq.s32.totalorder %s14, 0
      %p118 = por %p116, %p117
      %p119 = scmp.ne.s32.totalorder %s111, %s113
      %p120 = scmp.eq.s32.totalorder %s19, 1
      %p121 = por %p119, %p120
      %p122 = scmp.ne.s32.totalorder %s113, %s114
      %p123 = scmp.eq.s32.totalorder %s19, 0
      %p124 = por %p122, %p123
      %p125 = scmp.ne.s32.totalorder %s113, %s114
      %p126 = scmp.eq.s32.totalorder %s20, 1
      %p127 = por %p125, %p126
      %p129 = scmp.ne.s32.totalorder %s114, %s128
      %p130 = scmp.eq.s32.totalorder %s20, 0
      %p131 = por %p129, %p130
      %s132 = ssub.s32 %s14, %s21
      %p133 = scmp.eq.s32.totalorder %s132, 0
      %s135 = sadd.s32 %s134, 1
      %s136 = scalar_select %p133, %s134, %s135
      %p139 = pneg %p133
      %p140 = scmp.eq.s32.totalorder %s14, 1
      %p141 = por %p139, %p140
      %p142 = scmp.ne.s32.totalorder %s134, %s137
      %p143 = scmp.eq.s32.totalorder %s14, 0
      %p144 = por %p142, %p143
      %p145 = scmp.ne.s32.totalorder %s134, %s137
      %p146 = scmp.eq.s32.totalorder %s19, 1
      %p147 = por %p145, %p146
      %p148 = scmp.ne.s32.totalorder %s137, %s138
      %p149 = scmp.eq.s32.totalorder %s19, 0
      %p150 = por %p148, %p149
      %p151 = scmp.ne.s32.totalorder %s137, %s138
      %p152 = scmp.eq.s32.totalorder %s20, 1
      %p153 = por %p151, %p152
      %p155 = scmp.ne.s32.totalorder %s138, %s154
      %p156 = scmp.eq.s32.totalorder %s20, 0
      %p157 = por %p155, %p156
      %p158 = scmp.le.s32.totalorder 1, %s14
      %p159 = scmp.lt.s32.totalorder %s14, 3
      %p160 = pnand %p158, %p159
      %p161 = pneg %p160
      // Predicated region
      $region9: #{tpu_custom_call.1} parent=5 // pred_check
        _
      $region10: #{tpu_custom_call.1} parent=5 // pred_check_branch
        %163 = sbr.rel (%p160) target = $region12
      $region11: #{tpu_custom_call.1} parent=5 // pred_region
        %s164 = ssub.s32 %s14, 1
        // Predicated region
        $region13: #{tpu_custom_call.1} parent=11 // pred_check
          %p165 = pneg %p61
        $region14: #{tpu_custom_call.1} parent=11 // pred_check_branch
          %167 = sbr.rel (%p165) target = $region16
        $region15: #{tpu_custom_call.1} parent=11 // pred_region
          _
        $region16: #{tpu_custom_call.1} parent=11 // pred_fallthru
          _
        // Predicated region
        $region17: #{tpu_custom_call.1} parent=11 // pred_check
          %p168 = pneg %p82
        $region18: #{tpu_custom_call.1} parent=11 // pred_check_branch
          %170 = sbr.rel (%p168) target = $region20
        $region19: #{tpu_custom_call.1} parent=11 // pred_region
          _
        $region20: #{tpu_custom_call.1} parent=11 // pred_fallthru
          _
        // Predicated region
        $region21: #{tpu_custom_call.1} parent=11 // pred_check
          %p171 = pneg %p103
        $region22: #{tpu_custom_call.1} parent=11 // pred_check_branch
          %173 = sbr.rel (%p171) target = $region24
        $region23: #{tpu_custom_call.1} parent=11 // pred_region
          _
        $region24: #{tpu_custom_call.1} parent=11 // pred_fallthru
          _
        // Predicated region
        $region25: #{tpu_custom_call.1} parent=11 // pred_check
          %p174 = pneg %p124
        $region26: #{tpu_custom_call.1} parent=11 // pred_check_branch
          %176 = sbr.rel (%p174) target = $region28
        $region27: #{tpu_custom_call.1} parent=11 // pred_region
          _
        $region28: #{tpu_custom_call.1} parent=11 // pred_fallthru
          _
      $region12: #{tpu_custom_call.1} parent=5 // pred_fallthru
        _
      %p177 = scmp.lt.s32.totalorder %s14, 2
      // Predicated region
      $region29: #{tpu_custom_call.1} parent=5 // pred_check
        %p178 = pneg %p177
      $region30: #{tpu_custom_call.1} parent=5 // pred_check_branch
        %180 = sbr.rel (%p178) target = $region32
      $region31: #{tpu_custom_call.1} parent=5 // pred_region
        // Predicated region
        $region33: #{tpu_custom_call.1} parent=31 // pred_check
          %p181 = pneg %p34
        $region34: #{tpu_custom_call.1} parent=31 // pred_check_branch
          %183 = sbr.rel (%p181) target = $region36
        $region35: #{tpu_custom_call.1} parent=31 // pred_region
          %p184 = scmp.lt.s32.totalorder %s14, 1
          %s185 = scalar_select %p184, %s14, 1
          %s186 = smul.addr %s185, 3
          %s187 = smul.addr %s186, 8
          %s188 = scalar_lea.vmem %s0, %s187
        $region36: #{tpu_custom_call.1} parent=31 // pred_fallthru
          _
      $region32: #{tpu_custom_call.1} parent=5 // pred_fallthru
        _
      %p189 = scmp.le.s32.totalorder 1, %s14
      %p190 = scmp.lt.s32.totalorder %s14, 3
      %p191 = pnand %p189, %p190
      %p192 = pneg %p191
      // Predicated region
      $region37: #{tpu_custom_call.1} parent=5 // pred_check
        _
      $region38: #{tpu_custom_call.1} parent=5 // pred_check_branch
        %194 = sbr.rel (%p191) target = $region40
      $region39: #{tpu_custom_call.1} parent=5 // pred_region
        %s195 = ssub.s32 %s14, 1
        %p196 = scmp.lt.s32.totalorder %s19, 1
        %s197 = scalar_select %p196, %s19, 1
        %s198 = smul.addr %s197, 3
        %s199 = smul.addr %s198, 8
        %s200 = scalar_lea.vmem %s0, %s199
        %p201 = pneg %p40
        %p202 = pneg %p37
        %p203 = pneg %p61
        %p204 = pneg %p58
        %p205 = pneg %p82
        %p206 = pneg %p79
        %p207 = pneg %p103
        %p208 = pneg %p100
        %p209 = pneg %p124
        %p210 = pneg %p121
        %p211 = pneg %p150
        %p212 = pneg %p147
        %s213 = sand.u32 %s137, 1
        %s214 = scalar_lea.sflag [#allocation4], %s213
        %s215 = sand.u32 %s137, 1
        %s216 = smul.addr %s215, 16
        %s217 = scalar_lea.vmem [#allocation3], %s216
        %p218 = scmp.lt.s32.totalorder %s19, 1
        %s219 = scalar_select %p218, %s19, 1
        %s220 = smul.addr %s219, 3
        %s221 = smul.addr %s220, 8
        %s222 = scalar_lea.vmem %s0, %s221
        %v224 = vld [vmem:[%s222] sm:$0xff]
        %v225 = vld [vmem:[%s222 + $0x8] sm:$0xff]
        %v226 = vpack.c.bf16 %v225, %v224
        %v227 = vld [vmem:[%s1] sm:$0xf]
        %v228 = vld [vmem:[%s1 + $0x4] sm:$0xf]
        %v229 = vld [vmem:[%s1 + $0x8] sm:$0xf]
        %v230 = vld [vmem:[%s1 + $0xc] sm:$0xf]
        %v231 = vld [vmem:[%s1 + $0x10] sm:$0xf]
        %v232 = vld [vmem:[%s1 + $0x14] sm:$0xf]
        %v233 = vld [vmem:[%s1 + $0x18] sm:$0xf]
        %v234 = vld [vmem:[%s1 + $0x1c] sm:$0xf]
        %v235 = vld [vmem:[%s1 + $0x20] sm:$0xf]
        %v236 = vld [vmem:[%s222 + $0x1] sm:$0xff]
        %v237 = vld [vmem:[%s222 + $0x9] sm:$0xff]
        %v238 = vpack.c.bf16 %v237, %v236
        %s239 = scalar_lea.vmem %s1, 36
        %v240 = vld [vmem:[%s239] sm:$0xf]
        %v241 = vld [vmem:[%s239 + $0x4] sm:$0xf]
        %v242 = vld [vmem:[%s239 + $0x8] sm:$0xf]
        %v243 = vld [vmem:[%s239 + $0xc] sm:$0xf]
        %v244 = vld [vmem:[%s239 + $0x10] sm:$0xf]
        %v245 = vld [vmem:[%s239 + $0x14] sm:$0xf]
        %v246 = vld [vmem:[%s239 + $0x18] sm:$0xf]
        %v247 = vld [vmem:[%s239 + $0x1c] sm:$0xf]
        %v248 = vld [vmem:[%s239 + $0x20] sm:$0xf]
        %v258 = vunpack.c.l.b16 %v240
        %v259 = vunpack.c.l.b16 %v241
        %v260 = vunpack.c.l.b16 %v242
        %v261 = vunpack.c.l.b16 %v243
        %v262 = vunpack.c.l.b16 %v244
        %v263 = vunpack.c.l.b16 %v245
        %v264 = vunpack.c.l.b16 %v246
        %v265 = vunpack.c.l.b16 %v247
        %v266 = vunpack.c.l.b16 %v248
        %v267 = vpack.c.b16 %v259, %v258
        %v268 = vpack.c.b16 %v261, %v260
        %v269 = vpack.c.b16 %v263, %v262
        %v270 = vpack.c.b16 %v265, %v264
        %v271 = vpack.c.b16 %v266, %v266
        %vm276 = vcmask 588800
        %v278 = vsel %vm276, %v238, 0
        %vm280 = vcmask 1043456
        %v282 = vsel %vm280, %v271, 0
        %284 = vmatprep.subr.bf16.mxu0 0
        %285 = vmatpush1.bf16.msra.mxu0 %v267
        %286 = vmatprep.subr.bf16.mxu0 0
        %287 = vmatpush1.bf16.msra.mxu0 %v268
        %288 = vmatprep.subr.bf16.mxu0 0
        %289 = vmatpush1.bf16.msra.mxu0 %v269
        %290 = vmatprep.subr.bf16.mxu0 0
        %291 = vmatpush1.bf16.msra.mxu0 %v270
        %292 = vmatprep.subr.bf16.mxu0 0
        %293 = vmatpush1.bf16.msra.mxu0 %v282
        %294 = vmatprep.subr.bf16.mxu0 0
        %295 = vmatpush1.bf16.msra.mxu0 0
        %296 = vmatprep.subr.bf16.mxu0 0
        %297 = vmatpush1.bf16.msra.mxu0 0
        %298 = vmatprep.subr.bf16.mxu0 0
        %299 = vmatpush1.bf16.msra.mxu0 0
        %300 = vmatprep.subr.bf16.mxu0 0
        %301 = vmatpush1.bf16.msra.mxu0 0
        %302 = vmatprep.subr.bf16.mxu0 0
        %303 = vmatpush1.bf16.msra.mxu0 0
        %304 = vmatprep.subr.bf16.mxu0 0
        %305 = vmatpush1.bf16.msra.mxu0 0
        %306 = vmatprep.subr.bf16.mxu0 0
        %307 = vmatpush1.bf16.msra.mxu0 0
        %308 = vmatprep.subr.bf16.mxu0 0
        %309 = vmatpush1.bf16.msra.mxu0 0
        %310 = vmatprep.subr.bf16.mxu0 0
        %311 = vmatpush1.bf16.msra.mxu0 0
        %312 = vmatprep.subr.bf16.mxu0 0
        %313 = vmatpush1.bf16.msra.mxu0 0
        %314 = vmatprep.subr.bf16.mxu0 0
        %315 = vmatpush1.bf16.msra.mxu0 0
        %316 = vmatprep.mubr.bf16.mxu0 0
        %317 = vmatmul.mubr.bf16.gmra.mrb[0].mxu0 %v278
        %v318 = vpop.f32.mrb[0].mxu0
        %v319 = vadd.f32 0.0, %v318
        %v320 = vpop.f32.mrb[0].mxu0
        %v321 = vpop.f32.mrb[0].mxu0
        %v322 = vadd.f32 0.0, %v321
        %v323 = vpop.f32.mrb[0].mxu0
        %324 = vdwg.mxu0
        %v334 = vunpack.c.l.b16 %v227
        %v335 = vunpack.c.l.b16 %v228
        %v336 = vunpack.c.l.b16 %v229
        %v337 = vunpack.c.l.b16 %v230
        %v338 = vunpack.c.l.b16 %v231
        %v339 = vunpack.c.l.b16 %v232
        %v340 = vunpack.c.l.b16 %v233
        %v341 = vunpack.c.l.b16 %v234
        %v342 = vunpack.c.l.b16 %v235
        %v343 = vpack.c.b16 %v335, %v334
        %v344 = vpack.c.b16 %v337, %v336
        %v345 = vpack.c.b16 %v339, %v338
        %v346 = vpack.c.b16 %v341, %v340
        %v347 = vpack.c.b16 %v342, %v342
        %v353 = vsel %vm276, %v226, 0
        %v356 = vsel %vm280, %v347, 0
        %358 = vmatprep.subr.bf16.mxu0 0
        %359 = vmatpush1.bf16.msra.mxu0 %v343
        %360 = vmatprep.subr.bf16.mxu0 0
        %361 = vmatpush1.bf16.msra.mxu0 %v344
        %362 = vmatprep.subr.bf16.mxu0 0
        %363 = vmatpush1.bf16.msra.mxu0 %v345
        %364 = vmatprep.subr.bf16.mxu0 0
        %365 = vmatpush1.bf16.msra.mxu0 %v346
        %366 = vmatprep.subr.bf16.mxu0 0
        %367 = vmatpush1.bf16.msra.mxu0 %v356
        %368 = vmatprep.subr.bf16.mxu0 0
        %369 = vmatpush1.bf16.msra.mxu0 0
        %370 = vmatprep.subr.bf16.mxu0 0
        %371 = vmatpush1.bf16.msra.mxu0 0
        %372 = vmatprep.subr.bf16.mxu0 0
        %373 = vmatpush1.bf16.msra.mxu0 0
        %374 = vmatprep.subr.bf16.mxu0 0
        %375 = vmatpush1.bf16.msra.mxu0 0
        %376 = vmatprep.subr.bf16.mxu0 0
        %377 = vmatpush1.bf16.msra.mxu0 0
        %378 = vmatprep.subr.bf16.mxu0 0
        %379 = vmatpush1.bf16.msra.mxu0 0
        %380 = vmatprep.subr.bf16.mxu0 0
        %381 = vmatpush1.bf16.msra.mxu0 0
        %382 = vmatprep.subr.bf16.mxu0 0
        %383 = vmatpush1.bf16.msra.mxu0 0
        %384 = vmatprep.subr.bf16.mxu0 0
        %385 = vmatpush1.bf16.msra.mxu0 0
        %386 = vmatprep.subr.bf16.mxu0 0
        %387 = vmatpush1.bf16.msra.mxu0 0
        %388 = vmatprep.subr.bf16.mxu0 0
        %389 = vmatpush1.bf16.msra.mxu0 0
        %390 = vmatprep.mubr.bf16.mxu0 0
        %391 = vmatmul.mubr.bf16.gmra.mrb[0].mxu0 %v353
        %v392 = vpop.f32.mrb[0].mxu0
        %v393 = vadd.f32 %v319, %v392
        %v394 = vpop.f32.mrb[0].mxu0
        %v395 = vpop.f32.mrb[0].mxu0
        %v396 = vadd.f32 %v322, %v395
        %v397 = vpop.f32.mrb[0].mxu0
        %398 = vdwg.mxu0
        %v399 = vld [vmem:[%s222 + $0x2] sm:$0xff]
        %v400 = vld [vmem:[%s222 + $0xa] sm:$0xff]
        %v401 = vpack.c.bf16 %v400, %v399
        %s402 = scalar_lea.vmem %s1, 72
        %v403 = vld [vmem:[%s402] sm:$0xf]
        %v404 = vld [vmem:[%s402 + $0x4] sm:$0xf]
        %v405 = vld [vmem:[%s402 + $0x8] sm:$0xf]
        %v406 = vld [vmem:[%s402 + $0xc] sm:$0xf]
        %v407 = vld [vmem:[%s402 + $0x10] sm:$0xf]
        %v408 = vld [vmem:[%s402 + $0x14] sm:$0xf]
        %v409 = vld [vmem:[%s402 + $0x18] sm:$0xf]
        %v410 = vld [vmem:[%s402 + $0x1c] sm:$0xf]
        %v411 = vld [vmem:[%s402 + $0x20] sm:$0xf]
        %v421 = vunpack.c.l.b16 %v403
        %v422 = vunpack.c.l.b16 %v404
        %v423 = vunpack.c.l.b16 %v405
        %v424 = vunpack.c.l.b16 %v406
        %v425 = vunpack.c.l.b16 %v407
        %v426 = vunpack.c.l.b16 %v408
        %v427 = vunpack.c.l.b16 %v409
        %v428 = vunpack.c.l.b16 %v410
        %v429 = vunpack.c.l.b16 %v411
        %v430 = vpack.c.b16 %v422, %v421
        %v431 = vpack.c.b16 %v424, %v423
        %v432 = vpack.c.b16 %v426, %v425
        %v433 = vpack.c.b16 %v428, %v427
        %v434 = vpack.c.b16 %v429, %v429
        %v440 = vsel %vm276, %v401, 0
        %v443 = vsel %vm280, %v434, 0
        %445 = vmatprep.subr.bf16.mxu0 0
        %446 = vmatpush1.bf16.msra.mxu0 %v430
        %447 = vmatprep.subr.bf16.mxu0 0
        %448 = vmatpush1.bf16.msra.mxu0 %v431
        %449 = vmatprep.subr.bf16.mxu0 0
        %450 = vmatpush1.bf16.msra.mxu0 %v432
        %451 = vmatprep.subr.bf16.mxu0 0
        %452 = vmatpush1.bf16.msra.mxu0 %v433
        %453 = vmatprep.subr.bf16.mxu0 0
        %454 = vmatpush1.bf16.msra.mxu0 %v443
        %455 = vmatprep.subr.bf16.mxu0 0
        %456 = vmatpush1.bf16.msra.mxu0 0
        %457 = vmatprep.subr.bf16.mxu0 0
        %458 = vmatpush1.bf16.msra.mxu0 0
        %459 = vmatprep.subr.bf16.mxu0 0
        %460 = vmatpush1.bf16.msra.mxu0 0
        %461 = vmatprep.subr.bf16.mxu0 0
        %462 = vmatpush1.bf16.msra.mxu0 0
        %463 = vmatprep.subr.bf16.mxu0 0
        %464 = vmatpush1.bf16.msra.mxu0 0
        %465 = vmatprep.subr.bf16.mxu0 0
        %466 = vmatpush1.bf16.msra.mxu0 0
        %467 = vmatprep.subr.bf16.mxu0 0
        %468 = vmatpush1.bf16.msra.mxu0 0
        %469 = vmatprep.subr.bf16.mxu0 0
        %470 = vmatpush1.bf16.msra.mxu0 0
        %471 = vmatprep.subr.bf16.mxu0 0
        %472 = vmatpush1.bf16.msra.mxu0 0
        %473 = vmatprep.subr.bf16.mxu0 0
        %474 = vmatpush1.bf16.msra.mxu0 0
        %475 = vmatprep.subr.bf16.mxu0 0
        %476 = vmatpush1.bf16.msra.mxu0 0
        %477 = vmatprep.mubr.bf16.mxu0 0
        %478 = vmatmul.mubr.bf16.gmra.mrb[0].mxu0 %v440
        %v479 = vpop.f32.mrb[0].mxu0
        %v480 = vadd.f32 0.0, %v479
        %v481 = vpop.f32.mrb[0].mxu0
        %v482 = vpop.f32.mrb[0].mxu0
        %v483 = vadd.f32 0.0, %v482
        %v484 = vpop.f32.mrb[0].mxu0
        %485 = vdwg.mxu0
        %v486 = vadd.f32 %v393, %v480
        %v487 = vadd.f32 %v396, %v483
        %v488 = vld [vmem:[%s2] sm:$0x1]
        %v490 = vlaneseq
        %v491 = vshrl.u32 %v490, 7
        %v492 = vsub.s32 0, %v491
        %v493 = vrot.slane %v488, %v492
        %v495 = vadd.f32 %v486, %v493
        %v496 = vadd.f32 %v487, %v493
        %v497 = vmax.f32 %v495, 0.0
        %v498 = vmax.f32 %v496, 0.0
        %vm499 = vcmask 581632
        %500 = vst.msk [vmem:[#allocation2] sm:$0x1] %vm499, 0.0
        %501 = vst.msk [vmem:[#allocation2 + $0x11] sm:$0x1] %vm499, 0.0
        %vm502 = vcmask 31744
        %503 = vst.msk [vmem:[#allocation2 + $0x1] sm:$0xff] %vm502, 0.0
        %504 = vst.msk [vmem:[#allocation2 + $0x9] sm:$0xff] %vm502, 0.0
        %vm505 = vcmask 589344
        %506 = vst.msk [vmem:[#allocation2 + $0x1] sm:$0xff] %vm505, 0.0
        %507 = vst.msk [vmem:[#allocation2 + $0x9] sm:$0xff] %vm505, 0.0
        %510 = vrot.lane.b32.xlu0 %v497, 4
        %v511 = vpop.permute.xlu0 %510
        %512 = vrot.lane.b32.xlu0 %v498, 4
        %v513 = vpop.permute.xlu0 %512
        %vm516 = vcmask 556064
        %517 = vst.msk [vmem:[#allocation2 + $0x1] sm:$0xff] %vm516, %v511
        %518 = vst.msk [vmem:[#allocation2 + $0x9] sm:$0xff] %vm516, %v513
        %v519 = vld [vmem:[#allocation2] sm:$0xff]
        %v520 = vld [vmem:[#allocation2 + $0x8] sm:$0xff]
        %v521 = vpack.c.bf16 %v520, %v519
        %v522 = vld [vmem:[%s3] sm:$0xf]
        %v523 = vld [vmem:[%s3 + $0x4] sm:$0xf]
        %v524 = vld [vmem:[%s3 + $0x8] sm:$0xf]
        %v525 = vld [vmem:[%s3 + $0xc] sm:$0xf]
        %v526 = vld [vmem:[%s3 + $0x10] sm:$0xf]
        %v527 = vld [vmem:[%s3 + $0x14] sm:$0xf]
        %v528 = vld [vmem:[%s3 + $0x18] sm:$0xf]
        %v529 = vld [vmem:[%s3 + $0x1c] sm:$0xf]
        %v530 = vld [vmem:[%s3 + $0x20] sm:$0xf]
        %v531 = vld [vmem:[#allocation2 + $0x1] sm:$0xff]
        %v532 = vld [vmem:[#allocation2 + $0x9] sm:$0xff]
        %v533 = vpack.c.bf16 %v532, %v531
        %s534 = scalar_lea.vmem %s3, 36
        %v535 = vld [vmem:[%s534] sm:$0xf]
        %v536 = vld [vmem:[%s534 + $0x4] sm:$0xf]
        %v537 = vld [vmem:[%s534 + $0x8] sm:$0xf]
        %v538 = vld [vmem:[%s534 + $0xc] sm:$0xf]
        %v539 = vld [vmem:[%s534 + $0x10] sm:$0xf]
        %v540 = vld [vmem:[%s534 + $0x14] sm:$0xf]
        %v541 = vld [vmem:[%s534 + $0x18] sm:$0xf]
        %v542 = vld [vmem:[%s534 + $0x1c] sm:$0xf]
        %v543 = vld [vmem:[%s534 + $0x20] sm:$0xf]
        %v553 = vunpack.c.l.b16 %v535
        %v554 = vunpack.c.l.b16 %v536
        %v555 = vunpack.c.l.b16 %v537
        %v556 = vunpack.c.l.b16 %v538
        %v557 = vunpack.c.l.b16 %v539
        %v558 = vunpack.c.l.b16 %v540
        %v559 = vunpack.c.l.b16 %v541
        %v560 = vunpack.c.l.b16 %v542
        %v561 = vunpack.c.l.b16 %v543
        %v562 = vpack.c.b16 %v554, %v553
        %v563 = vpack.c.b16 %v556, %v555
        %v564 = vpack.c.b16 %v558, %v557
        %v565 = vpack.c.b16 %v560, %v559
        %v566 = vpack.c.b16 %v561, %v561
        %v572 = vsel %vm276, %v533, 0
        %v575 = vsel %vm280, %v566, 0
        %577 = vmatprep.subr.bf16.mxu0 0
        %578 = vmatpush1.bf16.msra.mxu0 %v562
        %579 = vmatprep.subr.bf16.mxu0 0
        %580 = vmatpush1.bf16.msra.mxu0 %v563
        %581 = vmatprep.subr.bf16.mxu0 0
        %582 = vmatpush1.bf16.msra.mxu0 %v564
        %583 = vmatprep.subr.bf16.mxu0 0
        %584 = vmatpush1.bf16.msra.mxu0 %v565
        %585 = vmatprep.subr.bf16.mxu0 0
        %586 = vmatpush1.bf16.msra.mxu0 %v575
        %587 = vmatprep.subr.bf16.mxu0 0
        %588 = vmatpush1.bf16.msra.mxu0 0
        %589 = vmatprep.subr.bf16.mxu0 0
        %590 = vmatpush1.bf16.msra.mxu0 0
        %591 = vmatprep.subr.bf16.mxu0 0
        %592 = vmatpush1.bf16.msra.mxu0 0
        %593 = vmatprep.subr.bf16.mxu0 0
        %594 = vmatpush1.bf16.msra.mxu0 0
        %595 = vmatprep.subr.bf16.mxu0 0
        %596 = vmatpush1.bf16.msra.mxu0 0
        %597 = vmatprep.subr.bf16.mxu0 0
        %598 = vmatpush1.bf16.msra.mxu0 0
        %599 = vmatprep.subr.bf16.mxu0 0
        %600 = vmatpush1.bf16.msra.mxu0 0
        %601 = vmatprep.subr.bf16.mxu0 0
        %602 = vmatpush1.bf16.msra.mxu0 0
        %603 = vmatprep.subr.bf16.mxu0 0
        %604 = vmatpush1.bf16.msra.mxu0 0
        %605 = vmatprep.subr.bf16.mxu0 0
        %606 = vmatpush1.bf16.msra.mxu0 0
        %607 = vmatprep.subr.bf16.mxu0 0
        %608 = vmatpush1.bf16.msra.mxu0 0
        %609 = vmatprep.mubr.bf16.mxu0 0
        %610 = vmatmul.mubr.bf16.gmra.mrb[0].mxu0 %v572
        %v611 = vpop.f32.mrb[0].mxu0
        %v612 = vadd.f32 0.0, %v611
        %v613 = vpop.f32.mrb[0].mxu0
        %v614 = vpop.f32.mrb[0].mxu0
        %v615 = vadd.f32 0.0, %v614
        %v616 = vpop.f32.mrb[0].mxu0
        %617 = vdwg.mxu0
        %v627 = vunpack.c.l.b16 %v522
        %v628 = vunpack.c.l.b16 %v523
        %v629 = vunpack.c.l.b16 %v524
        %v630 = vunpack.c.l.b16 %v525
        %v631 = vunpack.c.l.b16 %v526
        %v632 = vunpack.c.l.b16 %v527
        %v633 = vunpack.c.l.b16 %v528
        %v634 = vunpack.c.l.b16 %v529
        %v635 = vunpack.c.l.b16 %v530
        %v636 = vpack.c.b16 %v628, %v627
        %v637 = vpack.c.b16 %v630, %v629
        %v638 = vpack.c.b16 %v632, %v631
        %v639 = vpack.c.b16 %v634, %v633
        %v640 = vpack.c.b16 %v635, %v635
        %v646 = vsel %vm276, %v521, 0
        %v649 = vsel %vm280, %v640, 0
        %651 = vmatprep.subr.bf16.mxu0 0
        %652 = vmatpush1.bf16.msra.mxu0 %v636
        %653 = vmatprep.subr.bf16.mxu0 0
        %654 = vmatpush1.bf16.msra.mxu0 %v637
        %655 = vmatprep.subr.bf16.mxu0 0
        %656 = vmatpush1.bf16.msra.mxu0 %v638
        %657 = vmatprep.subr.bf16.mxu0 0
        %658 = vmatpush1.bf16.msra.mxu0 %v639
        %659 = vmatprep.subr.bf16.mxu0 0
        %660 = vmatpush1.bf16.msra.mxu0 %v649
        %661 = vmatprep.subr.bf16.mxu0 0
        %662 = vmatpush1.bf16.msra.mxu0 0
        %663 = vmatprep.subr.bf16.mxu0 0
        %664 = vmatpush1.bf16.msra.mxu0 0
        %665 = vmatprep.subr.bf16.mxu0 0
        %666 = vmatpush1.bf16.msra.mxu0 0
        %667 = vmatprep.subr.bf16.mxu0 0
        %668 = vmatpush1.bf16.msra.mxu0 0
        %669 = vmatprep.subr.bf16.mxu0 0
        %670 = vmatpush1.bf16.msra.mxu0 0
        %671 = vmatprep.subr.bf16.mxu0 0
        %672 = vmatpush1.bf16.msra.mxu0 0
        %673 = vmatprep.subr.bf16.mxu0 0
        %674 = vmatpush1.bf16.msra.mxu0 0
        %675 = vmatprep.subr.bf16.mxu0 0
        %676 = vmatpush1.bf16.msra.mxu0 0
        %677 = vmatprep.subr.bf16.mxu0 0
        %678 = vmatpush1.bf16.msra.mxu0 0
        %679 = vmatprep.subr.bf16.mxu0 0
        %680 = vmatpush1.bf16.msra.mxu0 0
        %681 = vmatprep.subr.bf16.mxu0 0
        %682 = vmatpush1.bf16.msra.mxu0 0
        %683 = vmatprep.mubr.bf16.mxu0 0
        %684 = vmatmul.mubr.bf16.gmra.mrb[0].mxu0 %v646
        %v685 = vpop.f32.mrb[0].mxu0
        %v686 = vadd.f32 %v612, %v685
        %v687 = vpop.f32.mrb[0].mxu0
        %v688 = vpop.f32.mrb[0].mxu0
        %v689 = vadd.f32 %v615, %v688
        %v690 = vpop.f32.mrb[0].mxu0
        %691 = vdwg.mxu0
        %v692 = vld [vmem:[#allocation2 + $0x2] sm:$0xff]
        %v693 = vld [vmem:[#allocation2 + $0xa] sm:$0xff]
        %v694 = vpack.c.bf16 %v693, %v692
        %s695 = scalar_lea.vmem %s3, 72
        %v696 = vld [vmem:[%s695] sm:$0xf]
        %v697 = vld [vmem:[%s695 + $0x4] sm:$0xf]
        %v698 = vld [vmem:[%s695 + $0x8] sm:$0xf]
        %v699 = vld [vmem:[%s695 + $0xc] sm:$0xf]
        %v700 = vld [vmem:[%s695 + $0x10] sm:$0xf]
        %v701 = vld [vmem:[%s695 + $0x14] sm:$0xf]
        %v702 = vld [vmem:[%s695 + $0x18] sm:$0xf]
        %v703 = vld [vmem:[%s695 + $0x1c] sm:$0xf]
        %v704 = vld [vmem:[%s695 + $0x20] sm:$0xf]
        %v714 = vunpack.c.l.b16 %v696
        %v715 = vunpack.c.l.b16 %v697
        %v716 = vunpack.c.l.b16 %v698
        %v717 = vunpack.c.l.b16 %v699
        %v718 = vunpack.c.l.b16 %v700
        %v719 = vunpack.c.l.b16 %v701
        %v720 = vunpack.c.l.b16 %v702
        %v721 = vunpack.c.l.b16 %v703
        %v722 = vunpack.c.l.b16 %v704
        %v723 = vpack.c.b16 %v715, %v714
        %v724 = vpack.c.b16 %v717, %v716
        %v725 = vpack.c.b16 %v719, %v718
        %v726 = vpack.c.b16 %v721, %v720
        %v727 = vpack.c.b16 %v722, %v722
        %v733 = vsel %vm276, %v694, 0
        %v736 = vsel %vm280, %v727, 0
        %738 = vmatprep.subr.bf16.mxu0 0
        %739 = vmatpush1.bf16.msra.mxu0 %v723
        %740 = vmatprep.subr.bf16.mxu0 0
        %741 = vmatpush1.bf16.msra.mxu0 %v724
        %742 = vmatprep.subr.bf16.mxu0 0
        %743 = vmatpush1.bf16.msra.mxu0 %v725
        %744 = vmatprep.subr.bf16.mxu0 0
        %745 = vmatpush1.bf16.msra.mxu0 %v726
        %746 = vmatprep.subr.bf16.mxu0 0
        %747 = vmatpush1.bf16.msra.mxu0 %v736
        %748 = vmatprep.subr.bf16.mxu0 0
        %749 = vmatpush1.bf16.msra.mxu0 0
        %750 = vmatprep.subr.bf16.mxu0 0
        %751 = vmatpush1.bf16.msra.mxu0 0
        %752 = vmatprep.subr.bf16.mxu0 0
        %753 = vmatpush1.bf16.msra.mxu0 0
        %754 = vmatprep.subr.bf16.mxu0 0
        %755 = vmatpush1.bf16.msra.mxu0 0
        %756 = vmatprep.subr.bf16.mxu0 0
        %757 = vmatpush1.bf16.msra.mxu0 0
        %758 = vmatprep.subr.bf16.mxu0 0
        %759 = vmatpush1.bf16.msra.mxu0 0
        %760 = vmatprep.subr.bf16.mxu0 0
        %761 = vmatpush1.bf16.msra.mxu0 0
        %762 = vmatprep.subr.bf16.mxu0 0
        %763 = vmatpush1.bf16.msra.mxu0 0
        %764 = vmatprep.subr.bf16.mxu0 0
        %765 = vmatpush1.bf16.msra.mxu0 0
        %766 = vmatprep.subr.bf16.mxu0 0
        %767 = vmatpush1.bf16.msra.mxu0 0
        %768 = vmatprep.subr.bf16.mxu0 0
        %769 = vmatpush1.bf16.msra.mxu0 0
        %770 = vmatprep.mubr.bf16.mxu0 0
        %771 = vmatmul.mubr.bf16.gmra.mrb[0].mxu0 %v733
        %v772 = vpop.f32.mrb[0].mxu0
        %v773 = vadd.f32 0.0, %v772
        %v774 = vpop.f32.mrb[0].mxu0
        %v775 = vpop.f32.mrb[0].mxu0
        %v776 = vadd.f32 0.0, %v775
        %v777 = vpop.f32.mrb[0].mxu0
        %778 = vdwg.mxu0
        %v779 = vadd.f32 %v686, %v773
        %v780 = vadd.f32 %v689, %v776
        %v781 = vld [vmem:[%s4] sm:$0x1]
        %v783 = vlaneseq
        %v784 = vshrl.u32 %v783, 7
        %v785 = vsub.s32 0, %v784
        %v786 = vrot.slane %v781, %v785
        %v788 = vadd.f32 %v779, %v786
        %v789 = vadd.f32 %v780, %v786
        %v790 = vld [vmem:[%s222 + $0x1] sm:$0xff]
        %v791 = vld [vmem:[%s222 + $0x9] sm:$0xff]
        %794 = vrot.lane.b32.xlu0 %v790, 124
        %v795 = vpop.permute.xlu0 %794
        %796 = vrot.lane.b32.xlu0 %v791, 124
        %v797 = vpop.permute.xlu0 %796
        %v800 = vadd.f32 %v788, %v795
        %v801 = vadd.f32 %v789, %v797
        %v802 = vmax.f32 %v800, 0.0
        %v803 = vmax.f32 %v801, 0.0
        %vm804 = vcmask 523264
        %805 = vst.msk [vmem:[%s217] sm:$0xff] %vm804, %v802
        %806 = vst.msk [vmem:[%s217 + $0x8] sm:$0xff] %vm804, %v803
        %s807 = sand.u32 %s137, 1
        %s808 = scalar_lea.sflag [#allocation4], %s807
        %s809 = sand.u32 %s137, 1
        %s810 = smul.addr %s809, 16
        %s811 = scalar_lea.vmem [#allocation3], %s810
        // Predicated region
        $region41: #{tpu_custom_call.1} parent=39 // pred_check
          %p812 = pneg %p147
        $region42: #{tpu_custom_call.1} parent=39 // pred_check_branch
          %814 = sbr.rel (%p812) target = $region44
        $region43: #{tpu_custom_call.1} parent=39 // pred_region
          %s816 = ssub.s32 256, 256
          %817 = vsyncadd %s808, %s816
          %s818 = smul.addr %s19, 2
          %s819 = smul.addr %s818, 128
          %s820 = scalar_lea.hbm %s5, %s819
          %s821 = sshll.u32 %s811, 4
          %s822 = int_to_ptr.vmem [resolvable:$true] %s821
          %827 = dma.vmem_to_hbm [thread:$0]  %s822, 256, %s820, %s808, 128, 128, 8
        $region44: #{tpu_custom_call.1} parent=39 // pred_fallthru
          _
      $region40: #{tpu_custom_call.1} parent=5 // pred_fallthru
        _
      %p828 = scmp.le.s32.totalorder 2, %s14
      // Predicated region
      $region45: #{tpu_custom_call.1} parent=5 // pred_check
        %p829 = pneg %p828
      $region46: #{tpu_custom_call.1} parent=5 // pred_check_branch
        %831 = sbr.rel (%p829) target = $region48
      $region47: #{tpu_custom_call.1} parent=5 // pred_region
        %s832 = ssub.s32 %s14, 2
        // Predicated region
        $region49: #{tpu_custom_call.1} parent=47 // pred_check
          %p833 = pneg %p153
        $region50: #{tpu_custom_call.1} parent=47 // pred_check_branch
          %835 = sbr.rel (%p833) target = $region52
        $region51: #{tpu_custom_call.1} parent=47 // pred_region
          %s836 = sand.u32 %s138, 1
          %s837 = scalar_lea.sflag [#allocation4], %s836
          %s838 = sand.u32 %s138, 1
          %s839 = smul.addr %s838, 16
          %s840 = scalar_lea.vmem [#allocation3], %s839
          %841 = dma.done %s837, 256
        $region52: #{tpu_custom_call.1} parent=47 // pred_fallthru
          _
      $region48: #{tpu_custom_call.1} parent=5 // pred_fallthru
        _
    $region6: #{tpu_custom_call.1} parent=1 // loop_footer
      %s18 = sadd.s32 1, %s14
    $region7: #{tpu_custom_call.1} parent=1 // loop_footer_branch
      %13 = sbr.rel target = $region3
    $region8: #{tpu_custom_call.1} parent=1 // loop_exit
      _
    %842 = vsyncpa [#allocation4], 1
    %s843 = scalar_lea.sflag [#allocation4], 1
    %844 = vsyncpa %s843, 1

</llo_original>
